<compile_context>
chip_gen: v6e
topology: v6e:2x2x1
jax: 0.10.0
libtpu: 0.0.40
codegen_flags: <defaults>
</compile_context>

<pallas_src>
import functools

import jax
import jax.numpy as jnp
from jax.experimental import pallas as pl
from jax.experimental.pallas import tpu as pltpu


def _linear_clamp_kernel(x_ref, w_ref, b_ref, o_ref, *, clamp_min, clamp_max):
    # MXU matmul; bias add + clamp on the VPU (f32 epilogue, correct on v5e).
    y = jnp.dot(x_ref[...], w_ref[...], preferred_element_type=jnp.float32)
    y = y + b_ref[...]                       # bias broadcast over rows
    y = jnp.clip(y, clamp_min, clamp_max)    # clamp_min then clamp_max
    o_ref[...] = y.astype(o_ref.dtype)


def _round_up(v, m):
    return ((v + m - 1) // m) * m


def linear_clamp(x, w, b, clamp_min, clamp_max, *, tm=4096):
    """x: (B, K) f32, w: (K, N) f32, b: (1, N) f32, clamp_{min,max}: python floats."""
    B, K = x.shape
    _, N = w.shape

    # Tile size: multiple of 8 sublanes; big enough to amortize per-step
    # overhead (targets 2-4 MiB of x+out bytes per step), but never so big
    # that the grid collapses to a single step when B is large enough to be
    # split across two TensorCores (v7x megacore).
    tm = int(min(tm, max(8, _round_up(pl.cdiv(B, 2), 8))))
    grid = (pl.cdiv(B, tm),)

    kernel = functools.partial(
        _linear_clamp_kernel,
        clamp_min=float(clamp_min),
        clamp_max=float(clamp_max),
    )

    cost = pl.CostEstimate(
        flops=2 * B * K * N,
        bytes_accessed=B * (K + N) * 4 + K * N * 4 + N * 4,
        transcendentals=0,
    )

    out = pl.pallas_call(
        kernel,
        out_shape=jax.ShapeDtypeStruct((B, N), x.dtype),
        grid=grid,
        in_specs=[
            pl.BlockSpec((tm, K), lambda i: (i, 0)),   # x tile, streamed over batch
            pl.BlockSpec((K, N), lambda i: (0, 0)),    # W: VMEM-resident (same block every step)
            pl.BlockSpec((1, N), lambda i: (0, 0)),    # bias: VMEM-resident
        ],
        out_specs=pl.BlockSpec((tm, N), lambda i: (i, 0)),
        compiler_params=pltpu.CompilerParams(
            dimension_semantics=("parallel",),         # megacore split on v7x
        ),
        cost_estimate=cost,
    )(x, w, b)

    return out


if __name__ == "__main__":
    key = jax.random.PRNGKey(0)
    kx, kw, kb, kx2 = jax.random.split(key, 4)

    IN, OUT = 64, 128
    clamp_min = -0.5
    clamp_max = 0.5

    # Deterministic parameter init (mimics nn.Linear's uniform(-1/sqrt(in), 1/sqrt(in))).
    bound = 1.0 / jnp.sqrt(jnp.float32(IN))
    w_pt = jax.random.uniform(kw, (OUT, IN), dtype=jnp.float32,
                              minval=-bound, maxval=bound)   # PyTorch layout (out, in)
    b_pt = jax.random.uniform(kb, (OUT,), dtype=jnp.float32,
                              minval=-bound, maxval=bound)
    w = w_pt.T                       # (IN, OUT) for x @ W
    b = b_pt.reshape(1, OUT)

    # Case 1: the module's spec shape (1, 64) -- single partial (masked) block.
    x1 = jax.random.normal(kx, (1, IN), dtype=jnp.float32)
    out1 = linear_clamp(x1, w, b, clamp_min, clamp_max)
    jax.block_until_ready(out1)
    ref1 = jnp.clip(x1 @ w + b, clamp_min, clamp_max)
    assert out1.shape == (1, OUT)
    assert jnp.allclose(out1, ref1, atol=1e-5, rtol=1e-5)

    # Case 2: a batched call exercising the grid (2 tiles; no host pad/slice).
    B2 = 1024
    x2 = jax.random.normal(kx2, (B2, IN), dtype=jnp.float32)
    out2 = linear_clamp(x2, w, b, clamp_min, clamp_max)
    jax.block_until_ready(out2)
    ref2 = jnp.clip(x2 @ w + b, clamp_min, clamp_max)
    assert out2.shape == (B2, OUT)
    assert jnp.allclose(out2, ref2, atol=1e-5, rtol=1e-5)

    # Case 3: non-divisible batch to exercise the masked partial last block.
    B3 = 1000
    x3 = jax.random.normal(kx, (B3, IN), dtype=jnp.float32)
    out3 = linear_clamp(x3, w, b, clamp_min, clamp_max)
    jax.block_until_ready(out3)
    ref3 = jnp.clip(x3 @ w + b, clamp_min, clamp_max)
    assert out3.shape == (B3, OUT)
    assert jnp.allclose(out3, ref3, atol=1e-5, rtol=1e-5)

    print("KERNEL_OK")
</pallas_src>

<mosaic_0001>
module attributes {stable_mosaic.version = 11 : i64} {
  func.func @_linear_clamp_kernel(%arg0: i32, %arg1: memref<8x64xf32, #tpu.memory_space<vmem>>, %arg2: memref<64x128xf32, #tpu.memory_space<vmem>>, %arg3: memref<1x128xf32, #tpu.memory_space<vmem>>, %arg4: memref<8x128xf32, #tpu.memory_space<vmem>>) attributes {dimension_semantics = [#tpu.dimension_semantics<parallel>], iteration_bounds = array<i64: 1>, scalar_prefetch = 0 : i64, scratch_operands = 0 : i64, tpu.core_type = #tpu.core_type<tc>, window_params = [{transform_indices = @transform_0, window_bounds = array<i64: 8, 64>}, {pipeline_mode = #tpu.pipeline_mode<synchronous>, transform_indices = @transform_1, window_bounds = array<i64: 64, 128>}, {pipeline_mode = #tpu.pipeline_mode<synchronous>, transform_indices = @transform_2, window_bounds = array<i64: 1, 128>}, {transform_indices = @transform_3, window_bounds = array<i64: 8, 128>}]} {
    %c0 = arith.constant 0 : index
    %c0_0 = arith.constant 0 : index
    %0 = vector.load %arg1[%c0, %c0_0] : memref<8x64xf32, #tpu.memory_space<vmem>>, vector<8x64xf32>
    %c0_1 = arith.constant 0 : index
    %c0_2 = arith.constant 0 : index
    %1 = vector.load %arg2[%c0_1, %c0_2] : memref<64x128xf32, #tpu.memory_space<vmem>>, vector<64x128xf32>
    %cst = arith.constant dense<0.000000e+00> : vector<8x128xf32>
    %2 = tpu.matmul %0, %1, %cst {dimension_numbers = #tpu.dot_dimension_numbers<[1], [0], [0], [1], [0, 0, 1, 1], [], []>} : vector<8x64xf32>, vector<64x128xf32>, vector<8x128xf32> -> vector<8x128xf32>
    %c0_3 = arith.constant 0 : index
    %c0_4 = arith.constant 0 : index
    %3 = vector.load %arg3[%c0_3, %c0_4] : memref<1x128xf32, #tpu.memory_space<vmem>>, vector<1x128xf32>
    %4 = vector.broadcast %3 : vector<1x128xf32> to vector<8x128xf32>
    %5 = arith.addf %2, %4 : vector<8x128xf32>
    %cst_5 = arith.constant -5.000000e-01 : f32
    %cst_6 = arith.constant 5.000000e-01 : f32
    %6 = vector.broadcast %cst_5 : f32 to vector<8x128xf32>
    %7 = arith.maximumf %6, %5 : vector<8x128xf32>
    %8 = vector.broadcast %cst_6 : f32 to vector<8x128xf32>
    %9 = arith.minimumf %8, %7 : vector<8x128xf32>
    %c0_7 = arith.constant 0 : index
    %c0_8 = arith.constant 0 : index
    %10 = vector.load %arg4[%c0_7, %c0_8] : memref<8x128xf32, #tpu.memory_space<vmem>>, vector<8x128xf32>
    tpu.vector_store %arg4[%c0_7, %c0_8], %9 {strides = array<i32>} : memref<8x128xf32, #tpu.memory_space<vmem>>, vector<8x128xf32>,
    return
  }
  func.func @transform_0(%arg0: i32) -> (i32, i32) {
    %c0_i32 = arith.constant 0 : i32
    %c0_i32_0 = arith.constant 0 : i32
    return %arg0, %c0_i32 : i32, i32
  }
  func.func @transform_1(%arg0: i32) -> (i32, i32) {
    %c0_i32 = arith.constant 0 : i32
    %c0_i32_0 = arith.constant 0 : i32
    %c0_i32_1 = arith.constant 0 : i32
    return %c0_i32, %c0_i32_0 : i32, i32
  }
  func.func @transform_2(%arg0: i32) -> (i32, i32) {
    %c0_i32 = arith.constant 0 : i32
    %c0_i32_0 = arith.constant 0 : i32
    %c0_i32_1 = arith.constant 0 : i32
    return %c0_i32, %c0_i32_0 : i32, i32
  }
  func.func @transform_3(%arg0: i32) -> (i32, i32) {
    %c0_i32 = arith.constant 0 : i32
    %c0_i32_0 = arith.constant 0 : i32
    return %arg0, %c0_i32 : i32, i32
  }
}

</mosaic_0001>

<llo_original>
// kernel: tpu_custom_call.1
$region0: #{tpu_custom_call.1}
  #allocation0 [shape = 'u32[]', space=smem, size = 0x4, offset = 0x4, fixed_abs, tag = 'smem constant byte address 0x4 - core index']
  #allocation1 [shape = 'u32[144,128]{1,0:T(1,128)}', space=vmem, size = 0x12000, scoped, tag = 'internal scratch']
  %s0 = inlined_call_operand.hbm [shape: f32[1,64], index: 0, kind: input, shape index: {}]
  %s1 = inlined_call_operand.hbm [shape: f32[64,128], index: 1, kind: input, shape index: {}]
  %s2 = inlined_call_operand.vmem [shape: f32[1,128], index: 2, kind: input, shape index: {}]
  %s3 = inlined_call_operand.hbm [shape: f32[1,128], index: 3, kind: output, shape index: {}]
  %s4 = sld [smem:[#allocation0]]
  $region30: #{tpu_custom_call.1} parent=0
    _
  %s6 = ssub.s32 1, %s4
  %s7 = scalar_select 0, %s6, %s4
  $region1: #{tpu_custom_call.1} parent=0
    #allocation2 [shape = 'u8[4096]{0}', space=vmem, size = 0x1000, scoped, tag = 'input window, operand 0, single buffered']
    #allocation3 [shape = 's32[1]{0}', space=sflag, size = 0x4, scoped, tag = 'scoped memory for tpu_custom_call.1']
    #allocation4 [shape = 's32[1]{0}', space=sflag, size = 0x4, scoped, tag = 'scoped memory for tpu_custom_call.1']
    #allocation5 [shape = 'u8[32768]{0}', space=vmem, size = 0x8000, scoped, tag = 'input window, operand 1, single buffered']
    #allocation6 [shape = 's32[1]{0}', space=sflag, size = 0x4, scoped, tag = 'scoped memory for tpu_custom_call.1']
    #allocation7 [shape = 'u8[4096]{0}', space=vmem, size = 0x1000, scoped, tag = 'output window, operand 0, single buffered']
    %8 = vsyncpa [#allocation3], 0
    %9 = vsyncpa [#allocation6], 0
    %10 = vsyncpa [#allocation4], 0
    // Predicated region
    $region2: #{tpu_custom_call.1} parent=1 // pred_check
      _
    $region3: #{tpu_custom_call.1} parent=1 // pred_check_branch
      %12 = sbr.rel (0) target = $region5
    $region4: #{tpu_custom_call.1} parent=1 // pred_region
      %s14 = ssub.s32 128, 16
      %15 = vsyncadd [#allocation3], %s14
      %s16 = sshll.u32 [#allocation2], 4
      %s17 = int_to_ptr.vmem [resolvable:$true] %s16
      %22 = dma.hbm_to_vmem [thread:$0]  %s0, 16, %s17, [#allocation3], 16, 16, 1
    $region5: #{tpu_custom_call.1} parent=1 // pred_fallthru
      _
    // Predicated region
    $region6: #{tpu_custom_call.1} parent=1 // pred_check
      _
    $region7: #{tpu_custom_call.1} parent=1 // pred_check_branch
      %24 = sbr.rel (0) target = $region9
    $region8: #{tpu_custom_call.1} parent=1 // pred_region
      %s26 = ssub.s32 1024, 1024
      %27 = vsyncadd [#allocation6], %s26
      %s28 = sshll.u32 [#allocation5], 4
      %s29 = int_to_ptr.vmem [resolvable:$true] %s28
      %34 = dma.hbm_to_vmem [thread:$0]  %s1, 1024, %s29, [#allocation6], 128, 128, 8
    $region9: #{tpu_custom_call.1} parent=1 // pred_fallthru
      _
    // Predicated region
    $region10: #{tpu_custom_call.1} parent=1 // pred_check
      _
    $region11: #{tpu_custom_call.1} parent=1 // pred_check_branch
      %36 = sbr.rel (0) target = $region13
    $region12: #{tpu_custom_call.1} parent=1 // pred_region
      _
    $region13: #{tpu_custom_call.1} parent=1 // pred_fallthru
      _
    // Predicated region
    $region14: #{tpu_custom_call.1} parent=1 // pred_check
      _
    $region15: #{tpu_custom_call.1} parent=1 // pred_check_branch
      %38 = sbr.rel (0) target = $region17
    $region16: #{tpu_custom_call.1} parent=1 // pred_region
      %39 = dma.done [#allocation3], 128
    $region17: #{tpu_custom_call.1} parent=1 // pred_fallthru
      _
    // Predicated region
    $region18: #{tpu_custom_call.1} parent=1 // pred_check
      _
    $region19: #{tpu_custom_call.1} parent=1 // pred_check_branch
      %41 = sbr.rel (0) target = $region21
    $region20: #{tpu_custom_call.1} parent=1 // pred_region
      %42 = dma.done [#allocation6], 1024
    $region21: #{tpu_custom_call.1} parent=1 // pred_fallthru
      _
    %v43 = vld [vmem:[#allocation2] sm:$0xff]
    %v44 = vld [vmem:[#allocation5] sm:$0xff]
    %v45 = vld [vmem:[#allocation5 + $0x8] sm:$0xff]
    %v46 = vld [vmem:[#allocation5 + $0x10] sm:$0xff]
    %v47 = vld [vmem:[#allocation5 + $0x18] sm:$0xff]
    %v48 = vld [vmem:[#allocation5 + $0x20] sm:$0xff]
    %v49 = vld [vmem:[#allocation5 + $0x28] sm:$0xff]
    %v50 = vld [vmem:[#allocation5 + $0x30] sm:$0xff]
    %v51 = vld [vmem:[#allocation5 + $0x38] sm:$0xff]
    %v52 = vld [vmem:[%s2] sm:$0x1]
    %v54 = vlaneseq
    %v55 = vshrl.u32 %v54, 7
    %v56 = vsub.s32 0, %v55
    %v57 = vrot.slane %v52, %v56
    %vm59 = vcmask 523264
    %v61 = vsel %vm59, %v43, 0
    %63 = vmatprep.subr.mxu0 0.0
    %64 = vmatpush1.msra.mxu0 0.0
    %65 = vmatprep.subr.mxu0 0.0
    %66 = vmatpush1.msra.mxu0 0.0
    %67 = vmatprep.subr.mxu0 0.0
    %68 = vmatpush1.msra.mxu0 0.0
    %69 = vmatprep.subr.mxu0 0.0
    %70 = vmatpush1.msra.mxu0 0.0
    %71 = vmatprep.subr.mxu0 0.0
    %72 = vmatpush1.msra.mxu0 0.0
    %73 = vmatprep.subr.mxu0 0.0
    %74 = vmatpush1.msra.mxu0 0.0
    %75 = vmatprep.subr.mxu0 0.0
    %76 = vmatpush1.msra.mxu0 0.0
    %77 = vmatprep.subr.mxu0 0.0
    %78 = vmatpush1.msra.mxu0 0.0
    %79 = vmatprep.subr.mxu0 0.0
    %80 = vmatpush1.msra.mxu0 %v51
    %81 = vmatprep.subr.mxu0 0.0
    %82 = vmatpush1.msra.mxu0 %v50
    %83 = vmatprep.subr.mxu0 0.0
    %84 = vmatpush1.msra.mxu0 %v49
    %85 = vmatprep.subr.mxu0 0.0
    %86 = vmatpush1.msra.mxu0 %v48
    %87 = vmatprep.subr.mxu0 0.0
    %88 = vmatpush1.msra.mxu0 %v47
    %89 = vmatprep.subr.mxu0 0.0
    %90 = vmatpush1.msra.mxu0 %v46
    %91 = vmatprep.subr.mxu0 0.0
    %92 = vmatpush1.msra.mxu0 %v45
    %93 = vmatprep.subr.mxu0 0.0
    %94 = vmatpush1.msra.mxu0 %v44
    %95 = vmatprep.subr.mxu0 0.0
    %96 = vmatpush2.msra.mxu0 0.0
    %97 = vmatprep.subr.mxu0 0.0
    %98 = vmatpush2.msra.mxu0 0.0
    %99 = vmatprep.subr.mxu0 0.0
    %100 = vmatpush2.msra.mxu0 0.0
    %101 = vmatprep.subr.mxu0 0.0
    %102 = vmatpush2.msra.mxu0 0.0
    %103 = vmatprep.subr.mxu0 0.0
    %104 = vmatpush2.msra.mxu0 0.0
    %105 = vmatprep.subr.mxu0 0.0
    %106 = vmatpush2.msra.mxu0 0.0
    %107 = vmatprep.subr.mxu0 0.0
    %108 = vmatpush2.msra.mxu0 0.0
    %109 = vmatprep.subr.mxu0 0.0
    %110 = vmatpush2.msra.mxu0 0.0
    %111 = vmatprep.subr.mxu0 0.0
    %112 = vmatpush2.msra.mxu0 0.0
    %113 = vmatprep.subr.mxu0 0.0
    %114 = vmatpush2.msra.mxu0 0.0
    %115 = vmatprep.subr.mxu0 0.0
    %116 = vmatpush2.msra.mxu0 0.0
    %117 = vmatprep.subr.mxu0 0.0
    %118 = vmatpush2.msra.mxu0 0.0
    %119 = vmatprep.subr.mxu0 0.0
    %120 = vmatpush2.msra.mxu0 0.0
    %121 = vmatprep.subr.mxu0 0.0
    %122 = vmatpush2.msra.mxu0 0.0
    %123 = vmatprep.subr.mxu0 0.0
    %124 = vmatpush2.msra.mxu0 0.0
    %125 = vmatprep.subr.mxu0 0.0
    %126 = vmatpush2.msra.mxu0 0.0
    %127 = vmatprep.mubr.f32.mxu0 0.0
    %128 = vmatmul.mubr.f32.gmra.mxu0 %v61
    %v129 = vpop.f32.mrf.mxu0
    %v130 = vadd.f32 %v57, %v129
    %v131 = vpop.f32.mrf.mxu0
    %132 = vdwg.mxu0
    %v133 = vmax.f32 %v130, -0.5
    %v134 = vmin.f32 %v133, 0.5
    %135 = vst [vmem:[#allocation7] sm:$0xff] %v134
    // Predicated region
    $region22: #{tpu_custom_call.1} parent=1 // pred_check
      _
    $region23: #{tpu_custom_call.1} parent=1 // pred_check_branch
      %137 = sbr.rel (0) target = $region25
    $region24: #{tpu_custom_call.1} parent=1 // pred_region
      %s139 = ssub.s32 128, 16
      %140 = vsyncadd [#allocation4], %s139
      %s141 = sshll.u32 [#allocation7], 4
      %s142 = int_to_ptr.vmem [resolvable:$true] %s141
      %147 = dma.vmem_to_hbm [thread:$0]  %s142, 16, %s3, [#allocation4], 16, 16, 1
    $region25: #{tpu_custom_call.1} parent=1 // pred_fallthru
      _
    // Predicated region
    $region26: #{tpu_custom_call.1} parent=1 // pred_check
      _
    $region27: #{tpu_custom_call.1} parent=1 // pred_check_branch
      %149 = sbr.rel (0) target = $region29
    $region28: #{tpu_custom_call.1} parent=1 // pred_region
      %150 = dma.done [#allocation4], 128
    $region29: #{tpu_custom_call.1} parent=1 // pred_fallthru
      _
    %151 = vsyncpa [#allocation3], 1
    %152 = vsyncpa [#allocation6], 1
    %153 = vsyncpa [#allocation4], 1

</llo_original>
